<compile_context>
chip_gen: v5e
topology: v5e:2x2
jax: 0.10.0
libtpu: 0.0.40
codegen_flags: <defaults>
</compile_context>

<pallas_src>
import jax
import jax.numpy as jnp
from jax import lax
from jax.experimental import pallas as pl
from jax.experimental.pallas import tpu as pltpu


def _lstm_chunk_kernel(pg_ref, whh_ref, wlin_ref, blin_ref, out_ref,
                       h_scr, c_scr):
    """One grid step = one chunk of Tt timesteps of the LSTM recurrence.

    pg_ref:   (Tt, B, 4H) pregates = x @ W_ih^T + (b_ih + b_hh), time-major,
                          gate column order [i, f, o, g], float32.
    whh_ref:  (H, 4H)     hidden->gate weights (same column order), float32.
    wlin_ref: (H, O)      linear head weight (transposed), float32.
    blin_ref: (1, 1)      linear head bias in SMEM (module has O == 1).
    out_ref:  (B, O)      predictions from the last-timestep hidden state.
    h_scr/c_scr: (B, H)   float32 recurrent state, persistent across the grid.
    """
    t_chunk = pl.program_id(0)
    Tt = pg_ref.shape[0]
    B = h_scr.shape[0]
    H = whh_ref.shape[0]

    @pl.when(t_chunk == 0)
    def _():
        h_scr[...] = jnp.zeros_like(h_scr)
        c_scr[...] = jnp.zeros_like(c_scr)

    # Gate columns are [i | f | o | g]: sigmoid on the first 3H lanes, tanh on
    # the last H lanes -> one full-vreg lane-masked select instead of narrow
    # lane-offset slices on the EUP path.
    lane = lax.broadcasted_iota(jnp.int32, (B, 4 * H), 1)
    sig_mask = lane < 3 * H

    def step(tt, carry):
        # Only the hidden->gate matmul remains on the serial critical path;
        # the input projection/bias were hoisted into the wrapper einsum, and
        # the f32 state needs no cast before the matmul.
        gates = pg_ref[tt] + jnp.dot(
            h_scr[...], whh_ref[...], preferred_element_type=jnp.float32)
        act = jnp.where(sig_mask, jax.nn.sigmoid(gates), jnp.tanh(gates))
        # TODO(synk): on hardware, replace these lane-offset slices with
        # explicit pltpu.roll (shift H/2H/3H) so block extraction lands on the
        # XLU slot instead of compiler-inserted relayouts.
        i_g = act[:, 0 * H:1 * H]
        f_g = act[:, 1 * H:2 * H]
        o_g = act[:, 2 * H:3 * H]
        g_g = act[:, 3 * H:4 * H]
        c_new = f_g * c_scr[...] + i_g * g_g
        c_scr[...] = c_new
        h_scr[...] = o_g * jnp.tanh(c_new)
        return carry

    # Tt is small and static (<= 8): fully unroll the chunk for scheduler
    # visibility; long sequences are handled by more grid steps, not a longer
    # unroll (avoids vreg spills on the serial path).
    lax.fori_loop(0, Tt, step, 0, unroll=True)

    # Linear head on the last hidden state, only after the final chunk.
    @pl.when(t_chunk == pl.num_programs(0) - 1)
    def _():
        out_ref[...] = (
            jnp.dot(h_scr[...], wlin_ref[...],
                    preferred_element_type=jnp.float32)
            + blin_ref[0, 0]
        ).astype(out_ref.dtype)


def _largest_divisor_leq(n, cap):
    for d in range(min(n, cap), 0, -1):
        if n % d == 0:
            return d
    return 1


def crypto_lstm_forward(x_bti, kernel_params, *, t_chunk=8):
    """x_bti: (B, T, I) float32, batch-first (PyTorch convention).

    Returns predictions of shape (B, output_size), float32.
    """
    wih_t, whh_t, bias, wlin_t, blin = kernel_params
    B, T, I = x_bti.shape
    H = whh_t.shape[0]
    O = wlin_t.shape[1]
    assert O == 1, "linear-head bias is passed as an SMEM scalar (O == 1)"

    # Pad the batch to a full sublane group (8 rows); per-step vector and MXU
    # work is paid at full-vreg granularity anyway. Padded rows sliced off.
    B_pad = max(8, ((B + 7) // 8) * 8)
    if B_pad != B:
        x_bti = jnp.pad(x_bti, ((0, B_pad - B), (0, 0), (0, 0)))

    # Hoisted input projection + bias for ALL timesteps at once, with the
    # batch-first -> time-major transpose folded into the einsum.
    pregates = jnp.einsum(
        "bti,ig->tbg", x_bti, wih_t,
        preferred_element_type=jnp.float32) + bias          # (T, B_pad, 4H) f32

    Tt = _largest_divisor_leq(T, t_chunk)
    num_chunks = T // Tt

    out = pl.pallas_call(
        _lstm_chunk_kernel,
        out_shape=jax.ShapeDtypeStruct((B_pad, O), jnp.float32),
        grid=(num_chunks,),
        in_specs=[
            # pregates streamed chunk-by-chunk (Pallas double-buffers the DMA),
            # keeping VMEM bounded as T/B grow (v7x: 64 MiB).
            pl.BlockSpec((Tt, B_pad, 4 * H), lambda t: (t, 0, 0)),
            pl.BlockSpec((H, 4 * H), lambda t: (0, 0)),           # W_hh^T
            pl.BlockSpec((H, O), lambda t: (0, 0)),               # W_lin^T
            pl.BlockSpec(memory_space=pltpu.MemorySpace.SMEM),    # b_lin scalar
        ],
        out_specs=pl.BlockSpec((B_pad, O), lambda t: (0, 0)),
        scratch_shapes=[
            pltpu.VMEM((B_pad, H), jnp.float32),  # h
            pltpu.VMEM((B_pad, H), jnp.float32),  # c
        ],
        compiler_params=pltpu.CompilerParams(
            dimension_semantics=("arbitrary",)),
    )(pregates, whh_t, wlin_t, blin)
    return out[:B]


def init_params(key, input_size, hidden_size, output_size):
    """Raw PyTorch-layout params, U(-1/sqrt(H), 1/sqrt(H)) like nn.LSTM/Linear."""
    k = 1.0 / jnp.sqrt(jnp.float32(hidden_size))
    ks = jax.random.split(key, 6)
    weight_ih = jax.random.uniform(ks[0], (4 * hidden_size, input_size),
                                   jnp.float32, -k, k)
    weight_hh = jax.random.uniform(ks[1], (4 * hidden_size, hidden_size),
                                   jnp.float32, -k, k)
    bias_ih = jax.random.uniform(ks[2], (4 * hidden_size,), jnp.float32, -k, k)
    bias_hh = jax.random.uniform(ks[3], (4 * hidden_size,), jnp.float32, -k, k)
    lin_w = jax.random.uniform(ks[4], (output_size, hidden_size),
                               jnp.float32, -k, k)
    lin_b = jax.random.uniform(ks[5], (output_size,), jnp.float32, -k, k)
    return (weight_ih, weight_hh, bias_ih, bias_hh, lin_w, lin_b)


def _reorder_gates_ifgo_to_ifog(w):
    """PyTorch gate-row order [i, f, g, o] -> kernel order [i, f, o, g]."""
    i, f, g, o = jnp.split(w, 4, axis=0)
    return jnp.concatenate([i, f, o, g], axis=0)


def prepare_kernel_params(raw_params):
    """Kernel-side layouts: transposed, biases combined, gate columns [i,f,o,g].

    All float32 (the recurrence is latency-bound on tiny matmuls; bf16 MXU
    operands buy nothing here and cost a per-step cast on the critical path).
    """
    weight_ih, weight_hh, bias_ih, bias_hh, lin_w, lin_b = raw_params
    wih_t = _reorder_gates_ifgo_to_ifog(weight_ih).T.astype(jnp.float32)  # (I, 4H)
    whh_t = _reorder_gates_ifgo_to_ifog(weight_hh).T.astype(jnp.float32)  # (H, 4H)
    bias = _reorder_gates_ifgo_to_ifog(bias_ih + bias_hh).reshape(1, -1)  # (1, 4H)
    wlin_t = lin_w.T.astype(jnp.float32)                                  # (H, O)
    blin = lin_b.reshape(1, -1).astype(jnp.float32)                       # (1, O)
    return (wih_t, whh_t, bias.astype(jnp.float32), wlin_t, blin)


def reference_forward(x_bti, raw_params):
    """Pure-JAX fp32 reference matching torch nn.LSTM(batch_first)+nn.Linear."""
    weight_ih, weight_hh, bias_ih, bias_hh, lin_w, lin_b = raw_params
    B = x_bti.shape[0]
    H = weight_hh.shape[1]
    h0 = jnp.zeros((B, H), jnp.float32)
    c0 = jnp.zeros((B, H), jnp.float32)

    def step(carry, x_t):
        h, c = carry
        gates = x_t @ weight_ih.T + h @ weight_hh.T + bias_ih + bias_hh
        i_g = jax.nn.sigmoid(gates[:, 0 * H:1 * H])
        f_g = jax.nn.sigmoid(gates[:, 1 * H:2 * H])
        g_g = jnp.tanh(gates[:, 2 * H:3 * H])
        o_g = jax.nn.sigmoid(gates[:, 3 * H:4 * H])
        c = f_g * c + i_g * g_g
        h = o_g * jnp.tanh(c)
        return (h, c), None

    (h, _), _ = lax.scan(step, (h0, c0), jnp.transpose(x_bti, (1, 0, 2)))
    return h @ lin_w.T + lin_b


if __name__ == "__main__":
    # Small shapes consistent with the module's forward:
    # input_seq: (batch, seq_len, input_size); hidden size kept small.
    B, T, I, H, O = 2, 8, 8, 32, 1

    key = jax.random.PRNGKey(0)
    k_x, k_p = jax.random.split(key)
    x = jax.random.normal(k_x, (B, T, I), dtype=jnp.float32)
    raw_params = init_params(k_p, input_size=I, hidden_size=H, output_size=O)

    ref = reference_forward(x, raw_params)

    kernel_params = prepare_kernel_params(raw_params)
    out = jax.block_until_ready(crypto_lstm_forward(x, kernel_params))

    assert out.shape == (B, O)
    assert jnp.allclose(out, ref, atol=1e-4, rtol=1e-4), (out, ref)

    print("KERNEL_OK")
</pallas_src>

<mosaic_0001>
module attributes {stable_mosaic.version = 11 : i64} {
  func.func @_lstm_chunk_kernel(%arg0: i32, %arg1: memref<8x8x128xf32, #tpu.memory_space<vmem>>, %arg2: memref<32x128xf32, #tpu.memory_space<vmem>>, %arg3: memref<32x1xf32, #tpu.memory_space<vmem>>, %arg4: memref<1x1xf32, #tpu.memory_space<smem>>, %arg5: memref<8x1xf32, #tpu.memory_space<vmem>>, %arg6: memref<8x32xf32, #tpu.memory_space<vmem>>, %arg7: memref<8x32xf32, #tpu.memory_space<vmem>>) attributes {dimension_semantics = [#tpu.dimension_semantics<arbitrary>], iteration_bounds = array<i64: 1>, scalar_prefetch = 0 : i64, scratch_operands = 2 : i64, tpu.core_type = #tpu.core_type<tc>, window_params = [{transform_indices = @transform_0, window_bounds = array<i64: 8, 8, 128>}, {pipeline_mode = #tpu.pipeline_mode<synchronous>, transform_indices = @transform_1, window_bounds = array<i64: 32, 128>}, {pipeline_mode = #tpu.pipeline_mode<synchronous>, transform_indices = @transform_2, window_bounds = array<i64: 32, 1>}, {transform_indices = @transform_3, window_bounds = array<i64: 1, 1>}, {pipeline_mode = #tpu.pipeline_mode<synchronous>, transform_indices = @transform_4, window_bounds = array<i64: 8, 1>}]} {
    %c0_i32 = arith.constant 0 : i32
    %0 = arith.cmpi eq, %arg0, %c0_i32 : i32
    %1 = arith.extui %0 : i1 to i32
    %c0_i32_0 = arith.constant 0 : i32
    %2 = arith.cmpi ne, %1, %c0_i32_0 : i32
    scf.if %2 {
      %cst_114 = arith.constant 0.000000e+00 : f32
      %217 = vector.broadcast %cst_114 : f32 to vector<8x32xf32>
      %c0_115 = arith.constant 0 : index
      %c0_116 = arith.constant 0 : index
      %218 = vector.load %arg6[%c0_115, %c0_116] : memref<8x32xf32, #tpu.memory_space<vmem>>, vector<8x32xf32>
      tpu.vector_store %arg6[%c0_115, %c0_116], %217 {strides = array<i32>} : memref<8x32xf32, #tpu.memory_space<vmem>>, vector<8x32xf32>,
      %cst_117 = arith.constant 0.000000e+00 : f32
      %219 = vector.broadcast %cst_117 : f32 to vector<8x32xf32>
      %c0_118 = arith.constant 0 : index
      %c0_119 = arith.constant 0 : index
      %220 = vector.load %arg7[%c0_118, %c0_119] : memref<8x32xf32, #tpu.memory_space<vmem>>, vector<8x32xf32>
      tpu.vector_store %arg7[%c0_118, %c0_119], %219 {strides = array<i32>} : memref<8x32xf32, #tpu.memory_space<vmem>>, vector<8x32xf32>,
    } else {
    }
    %3 = tpu.iota {dimensions = array<i32: 1>} : vector<8x128xi32>
    %c96_i32 = arith.constant 96 : i32
    %4 = vector.broadcast %c96_i32 : i32 to vector<8x128xi32>
    %5 = arith.cmpi slt, %3, %4 : vector<8x128xi32>
    %c0_i32_1 = arith.constant 0 : i32
    %6 = arith.index_cast %c0_i32_1 : i32 to index
    %c0 = arith.constant 0 : index
    %c0_2 = arith.constant 0 : index
    %7 = vector.load %arg1[%6, %c0, %c0_2] : memref<8x8x128xf32, #tpu.memory_space<vmem>>, vector<1x8x128xf32>
    %8 = vector.shape_cast %7 : vector<1x8x128xf32> to vector<8x128xf32>
    %c0_3 = arith.constant 0 : index
    %c0_4 = arith.constant 0 : index
    %9 = vector.load %arg6[%c0_3, %c0_4] : memref<8x32xf32, #tpu.memory_space<vmem>>, vector<8x32xf32>
    %c0_5 = arith.constant 0 : index
    %c0_6 = arith.constant 0 : index
    %10 = vector.load %arg2[%c0_5, %c0_6] : memref<32x128xf32, #tpu.memory_space<vmem>>, vector<32x128xf32>
    %cst = arith.constant dense<0.000000e+00> : vector<8x128xf32>
    %11 = tpu.matmul %9, %10, %cst {dimension_numbers = #tpu.dot_dimension_numbers<[1], [0], [0], [1], [0, 0, 1, 1], [], []>} : vector<8x32xf32>, vector<32x128xf32>, vector<8x128xf32> -> vector<8x128xf32>
    %12 = arith.addf %8, %11 : vector<8x128xf32>
    %13 = arith.negf %12 : vector<8x128xf32>
    %14 = math.exp %13 : vector<8x128xf32>
    %cst_7 = arith.constant 1.000000e+00 : f32
    %15 = vector.broadcast %cst_7 : f32 to vector<8x128xf32>
    %16 = arith.addf %15, %14 : vector<8x128xf32>
    %17 = arith.divf %15, %16 : vector<8x128xf32>
    %18 = math.tanh %12 : vector<8x128xf32>
    %19 = arith.select %5, %17, %18 : vector<8x128xi1>, vector<8x128xf32>
    %20 = vector.extract_strided_slice %19 {offsets = [0, 0], sizes = [8, 32], strides = [1, 1]} : vector<8x128xf32> to vector<8x32xf32>
    %21 = vector.extract_strided_slice %19 {offsets = [0, 32], sizes = [8, 32], strides = [1, 1]} : vector<8x128xf32> to vector<8x32xf32>
    %22 = vector.extract_strided_slice %19 {offsets = [0, 64], sizes = [8, 32], strides = [1, 1]} : vector<8x128xf32> to vector<8x32xf32>
    %23 = vector.extract_strided_slice %19 {offsets = [0, 96], sizes = [8, 32], strides = [1, 1]} : vector<8x128xf32> to vector<8x32xf32>
    %c0_8 = arith.constant 0 : index
    %c0_9 = arith.constant 0 : index
    %24 = vector.load %arg7[%c0_8, %c0_9] : memref<8x32xf32, #tpu.memory_space<vmem>>, vector<8x32xf32>
    %25 = arith.mulf %21, %24 : vector<8x32xf32>
    %26 = arith.mulf %20, %23 : vector<8x32xf32>
    %27 = arith.addf %25, %26 : vector<8x32xf32>
    %c0_10 = arith.constant 0 : index
    %c0_11 = arith.constant 0 : index
    %28 = vector.load %arg7[%c0_10, %c0_11] : memref<8x32xf32, #tpu.memory_space<vmem>>, vector<8x32xf32>
    tpu.vector_store %arg7[%c0_10, %c0_11], %27 {strides = array<i32>} : memref<8x32xf32, #tpu.memory_space<vmem>>, vector<8x32xf32>,
    %29 = math.tanh %27 : vector<8x32xf32>
    %30 = arith.mulf %22, %29 : vector<8x32xf32>
    %c0_12 = arith.constant 0 : index
    %c0_13 = arith.constant 0 : index
    %31 = vector.load %arg6[%c0_12, %c0_13] : memref<8x32xf32, #tpu.memory_space<vmem>>, vector<8x32xf32>
    tpu.vector_store %arg6[%c0_12, %c0_13], %30 {strides = array<i32>} : memref<8x32xf32, #tpu.memory_space<vmem>>, vector<8x32xf32>,
    %c1_i32 = arith.constant 1 : i32
    %32 = arith.index_cast %c1_i32 : i32 to index
    %c0_14 = arith.constant 0 : index
    %c0_15 = arith.constant 0 : index
    %33 = vector.load %arg1[%32, %c0_14, %c0_15] : memref<8x8x128xf32, #tpu.memory_space<vmem>>, vector<1x8x128xf32>
    %34 = vector.shape_cast %33 : vector<1x8x128xf32> to vector<8x128xf32>
    %c0_16 = arith.constant 0 : index
    %c0_17 = arith.constant 0 : index
    %35 = vector.load %arg6[%c0_16, %c0_17] : memref<8x32xf32, #tpu.memory_space<vmem>>, vector<8x32xf32>
    %c0_18 = arith.constant 0 : index
    %c0_19 = arith.constant 0 : index
    %36 = vector.load %arg2[%c0_18, %c0_19] : memref<32x128xf32, #tpu.memory_space<vmem>>, vector<32x128xf32>
    %cst_20 = arith.constant dense<0.000000e+00> : vector<8x128xf32>
    %37 = tpu.matmul %35, %36, %cst_20 {dimension_numbers = #tpu.dot_dimension_numbers<[1], [0], [0], [1], [0, 0, 1, 1], [], []>} : vector<8x32xf32>, vector<32x128xf32>, vector<8x128xf32> -> vector<8x128xf32>
    %38 = arith.addf %34, %37 : vector<8x128xf32>
    %39 = arith.negf %38 : vector<8x128xf32>
    %40 = math.exp %39 : vector<8x128xf32>
    %cst_21 = arith.constant 1.000000e+00 : f32
    %41 = vector.broadcast %cst_21 : f32 to vector<8x128xf32>
    %42 = arith.addf %41, %40 : vector<8x128xf32>
    %43 = arith.divf %41, %42 : vector<8x128xf32>
    %44 = math.tanh %38 : vector<8x128xf32>
    %45 = arith.select %5, %43, %44 : vector<8x128xi1>, vector<8x128xf32>
    %46 = vector.extract_strided_slice %45 {offsets = [0, 0], sizes = [8, 32], strides = [1, 1]} : vector<8x128xf32> to vector<8x32xf32>
    %47 = vector.extract_strided_slice %45 {offsets = [0, 32], sizes = [8, 32], strides = [1, 1]} : vector<8x128xf32> to vector<8x32xf32>
    %48 = vector.extract_strided_slice %45 {offsets = [0, 64], sizes = [8, 32], strides = [1, 1]} : vector<8x128xf32> to vector<8x32xf32>
    %49 = vector.extract_strided_slice %45 {offsets = [0, 96], sizes = [8, 32], strides = [1, 1]} : vector<8x128xf32> to vector<8x32xf32>
    %c0_22 = arith.constant 0 : index
    %c0_23 = arith.constant 0 : index
    %50 = vector.load %arg7[%c0_22, %c0_23] : memref<8x32xf32, #tpu.memory_space<vmem>>, vector<8x32xf32>
    %51 = arith.mulf %47, %50 : vector<8x32xf32>
    %52 = arith.mulf %46, %49 : vector<8x32xf32>
    %53 = arith.addf %51, %52 : vector<8x32xf32>
    %c0_24 = arith.constant 0 : index
    %c0_25 = arith.constant 0 : index
    %54 = vector.load %arg7[%c0_24, %c0_25] : memref<8x32xf32, #tpu.memory_space<vmem>>, vector<8x32xf32>
    tpu.vector_store %arg7[%c0_24, %c0_25], %53 {strides = array<i32>} : memref<8x32xf32, #tpu.memory_space<vmem>>, vector<8x32xf32>,
    %55 = math.tanh %53 : vector<8x32xf32>
    %56 = arith.mulf %48, %55 : vector<8x32xf32>
    %c0_26 = arith.constant 0 : index
    %c0_27 = arith.constant 0 : index
    %57 = vector.load %arg6[%c0_26, %c0_27] : memref<8x32xf32, #tpu.memory_space<vmem>>, vector<8x32xf32>
    tpu.vector_store %arg6[%c0_26, %c0_27], %56 {strides = array<i32>} : memref<8x32xf32, #tpu.memory_space<vmem>>, vector<8x32xf32>,
    %c2_i32 = arith.constant 2 : i32
    %58 = arith.index_cast %c2_i32 : i32 to index
    %c0_28 = arith.constant 0 : index
    %c0_29 = arith.constant 0 : index
    %59 = vector.load %arg1[%58, %c0_28, %c0_29] : memref<8x8x128xf32, #tpu.memory_space<vmem>>, vector<1x8x128xf32>
    %60 = vector.shape_cast %59 : vector<1x8x128xf32> to vector<8x128xf32>
    %c0_30 = arith.constant 0 : index
    %c0_31 = arith.constant 0 : index
    %61 = vector.load %arg6[%c0_30, %c0_31] : memref<8x32xf32, #tpu.memory_space<vmem>>, vector<8x32xf32>
    %c0_32 = arith.constant 0 : index
    %c0_33 = arith.constant 0 : index
    %62 = vector.load %arg2[%c0_32, %c0_33] : memref<32x128xf32, #tpu.memory_space<vmem>>, vector<32x128xf32>
    %cst_34 = arith.constant dense<0.000000e+00> : vector<8x128xf32>
    %63 = tpu.matmul %61, %62, %cst_34 {dimension_numbers = #tpu.dot_dimension_numbers<[1], [0], [0], [1], [0, 0, 1, 1], [], []>} : vector<8x32xf32>, vector<32x128xf32>, vector<8x128xf32> -> vector<8x128xf32>
    %64 = arith.addf %60, %63 : vector<8x128xf32>
    %65 = arith.negf %64 : vector<8x128xf32>
    %66 = math.exp %65 : vector<8x128xf32>
    %cst_35 = arith.constant 1.000000e+00 : f32
    %67 = vector.broadcast %cst_35 : f32 to vector<8x128xf32>
    %68 = arith.addf %67, %66 : vector<8x128xf32>
    %69 = arith.divf %67, %68 : vector<8x128xf32>
    %70 = math.tanh %64 : vector<8x128xf32>
    %71 = arith.select %5, %69, %70 : vector<8x128xi1>, vector<8x128xf32>
    %72 = vector.extract_strided_slice %71 {offsets = [0, 0], sizes = [8, 32], strides = [1, 1]} : vector<8x128xf32> to vector<8x32xf32>
    %73 = vector.extract_strided_slice %71 {offsets = [0, 32], sizes = [8, 32], strides = [1, 1]} : vector<8x128xf32> to vector<8x32xf32>
    %74 = vector.extract_strided_slice %71 {offsets = [0, 64], sizes = [8, 32], strides = [1, 1]} : vector<8x128xf32> to vector<8x32xf32>
    %75 = vector.extract_strided_slice %71 {offsets = [0, 96], sizes = [8, 32], strides = [1, 1]} : vector<8x128xf32> to vector<8x32xf32>
    %c0_36 = arith.constant 0 : index
    %c0_37 = arith.constant 0 : index
    %76 = vector.load %arg7[%c0_36, %c0_37] : memref<8x32xf32, #tpu.memory_space<vmem>>, vector<8x32xf32>
    %77 = arith.mulf %73, %76 : vector<8x32xf32>
    %78 = arith.mulf %72, %75 : vector<8x32xf32>
    %79 = arith.addf %77, %78 : vector<8x32xf32>
    %c0_38 = arith.constant 0 : index
    %c0_39 = arith.constant 0 : index
    %80 = vector.load %arg7[%c0_38, %c0_39] : memref<8x32xf32, #tpu.memory_space<vmem>>, vector<8x32xf32>
    tpu.vector_store %arg7[%c0_38, %c0_39], %79 {strides = array<i32>} : memref<8x32xf32, #tpu.memory_space<vmem>>, vector<8x32xf32>,
    %81 = math.tanh %79 : vector<8x32xf32>
    %82 = arith.mulf %74, %81 : vector<8x32xf32>
    %c0_40 = arith.constant 0 : index
    %c0_41 = arith.constant 0 : index
    %83 = vector.load %arg6[%c0_40, %c0_41] : memref<8x32xf32, #tpu.memory_space<vmem>>, vector<8x32xf32>
    tpu.vector_store %arg6[%c0_40, %c0_41], %82 {strides = array<i32>} : memref<8x32xf32, #tpu.memory_space<vmem>>, vector<8x32xf32>,
    %c3_i32 = arith.constant 3 : i32
    %84 = arith.index_cast %c3_i32 : i32 to index
    %c0_42 = arith.constant 0 : index
    %c0_43 = arith.constant 0 : index
    %85 = vector.load %arg1[%84, %c0_42, %c0_43] : memref<8x8x128xf32, #tpu.memory_space<vmem>>, vector<1x8x128xf32>
    %86 = vector.shape_cast %85 : vector<1x8x128xf32> to vector<8x128xf32>
    %c0_44 = arith.constant 0 : index
    %c0_45 = arith.constant 0 : index
    %87 = vector.load %arg6[%c0_44, %c0_45] : memref<8x32xf32, #tpu.memory_space<vmem>>, vector<8x32xf32>
    %c0_46 = arith.constant 0 : index
    %c0_47 = arith.constant 0 : index
    %88 = vector.load %arg2[%c0_46, %c0_47] : memref<32x128xf32, #tpu.memory_space<vmem>>, vector<32x128xf32>
    %cst_48 = arith.constant dense<0.000000e+00> : vector<8x128xf32>
    %89 = tpu.matmul %87, %88, %cst_48 {dimension_numbers = #tpu.dot_dimension_numbers<[1], [0], [0], [1], [0, 0, 1, 1], [], []>} : vector<8x32xf32>, vector<32x128xf32>, vector<8x128xf32> -> vector<8x128xf32>
    %90 = arith.addf %86, %89 : vector<8x128xf32>
    %91 = arith.negf %90 : vector<8x128xf32>
    %92 = math.exp %91 : vector<8x128xf32>
    %cst_49 = arith.constant 1.000000e+00 : f32
    %93 = vector.broadcast %cst_49 : f32 to vector<8x128xf32>
    %94 = arith.addf %93, %92 : vector<8x128xf32>
    %95 = arith.divf %93, %94 : vector<8x128xf32>
    %96 = math.tanh %90 : vector<8x128xf32>
    %97 = arith.select %5, %95, %96 : vector<8x128xi1>, vector<8x128xf32>
    %98 = vector.extract_strided_slice %97 {offsets = [0, 0], sizes = [8, 32], strides = [1, 1]} : vector<8x128xf32> to vector<8x32xf32>
    %99 = vector.extract_strided_slice %97 {offsets = [0, 32], sizes = [8, 32], strides = [1, 1]} : vector<8x128xf32> to vector<8x32xf32>
    %100 = vector.extract_strided_slice %97 {offsets = [0, 64], sizes = [8, 32], strides = [1, 1]} : vector<8x128xf32> to vector<8x32xf32>
    %101 = vector.extract_strided_slice %97 {offsets = [0, 96], sizes = [8, 32], strides = [1, 1]} : vector<8x128xf32> to vector<8x32xf32>
    %c0_50 = arith.constant 0 : index
    %c0_51 = arith.constant 0 : index
    %102 = vector.load %arg7[%c0_50, %c0_51] : memref<8x32xf32, #tpu.memory_space<vmem>>, vector<8x32xf32>
    %103 = arith.mulf %99, %102 : vector<8x32xf32>
    %104 = arith.mulf %98, %101 : vector<8x32xf32>
    %105 = arith.addf %103, %104 : vector<8x32xf32>
    %c0_52 = arith.constant 0 : index
    %c0_53 = arith.constant 0 : index
    %106 = vector.load %arg7[%c0_52, %c0_53] : memref<8x32xf32, #tpu.memory_space<vmem>>, vector<8x32xf32>
    tpu.vector_store %arg7[%c0_52, %c0_53], %105 {strides = array<i32>} : memref<8x32xf32, #tpu.memory_space<vmem>>, vector<8x32xf32>,
    %107 = math.tanh %105 : vector<8x32xf32>
    %108 = arith.mulf %100, %107 : vector<8x32xf32>
    %c0_54 = arith.constant 0 : index
    %c0_55 = arith.constant 0 : index
    %109 = vector.load %arg6[%c0_54, %c0_55] : memref<8x32xf32, #tpu.memory_space<vmem>>, vector<8x32xf32>
    tpu.vector_store %arg6[%c0_54, %c0_55], %108 {strides = array<i32>} : memref<8x32xf32, #tpu.memory_space<vmem>>, vector<8x32xf32>,
    %c4_i32 = arith.constant 4 : i32
    %110 = arith.index_cast %c4_i32 : i32 to index
    %c0_56 = arith.constant 0 : index
    %c0_57 = arith.constant 0 : index
    %111 = vector.load %arg1[%110, %c0_56, %c0_57] : memref<8x8x128xf32, #tpu.memory_space<vmem>>, vector<1x8x128xf32>
    %112 = vector.shape_cast %111 : vector<1x8x128xf32> to vector<8x128xf32>
    %c0_58 = arith.constant 0 : index
    %c0_59 = arith.constant 0 : index
    %113 = vector.load %arg6[%c0_58, %c0_59] : memref<8x32xf32, #tpu.memory_space<vmem>>, vector<8x32xf32>
    %c0_60 = arith.constant 0 : index
    %c0_61 = arith.constant 0 : index
    %114 = vector.load %arg2[%c0_60, %c0_61] : memref<32x128xf32, #tpu.memory_space<vmem>>, vector<32x128xf32>
    %cst_62 = arith.constant dense<0.000000e+00> : vector<8x128xf32>
    %115 = tpu.matmul %113, %114, %cst_62 {dimension_numbers = #tpu.dot_dimension_numbers<[1], [0], [0], [1], [0, 0, 1, 1], [], []>} : vector<8x32xf32>, vector<32x128xf32>, vector<8x128xf32> -> vector<8x128xf32>
    %116 = arith.addf %112, %115 : vector<8x128xf32>
    %117 = arith.negf %116 : vector<8x128xf32>
    %118 = math.exp %117 : vector<8x128xf32>
    %cst_63 = arith.constant 1.000000e+00 : f32
    %119 = vector.broadcast %cst_63 : f32 to vector<8x128xf32>
    %120 = arith.addf %119, %118 : vector<8x128xf32>
    %121 = arith.divf %119, %120 : vector<8x128xf32>
    %122 = math.tanh %116 : vector<8x128xf32>
    %123 = arith.select %5, %121, %122 : vector<8x128xi1>, vector<8x128xf32>
    %124 = vector.extract_strided_slice %123 {offsets = [0, 0], sizes = [8, 32], strides = [1, 1]} : vector<8x128xf32> to vector<8x32xf32>
    %125 = vector.extract_strided_slice %123 {offsets = [0, 32], sizes = [8, 32], strides = [1, 1]} : vector<8x128xf32> to vector<8x32xf32>
    %126 = vector.extract_strided_slice %123 {offsets = [0, 64], sizes = [8, 32], strides = [1, 1]} : vector<8x128xf32> to vector<8x32xf32>
    %127 = vector.extract_strided_slice %123 {offsets = [0, 96], sizes = [8, 32], strides = [1, 1]} : vector<8x128xf32> to vector<8x32xf32>
    %c0_64 = arith.constant 0 : index
    %c0_65 = arith.constant 0 : index
    %128 = vector.load %arg7[%c0_64, %c0_65] : memref<8x32xf32, #tpu.memory_space<vmem>>, vector<8x32xf32>
    %129 = arith.mulf %125, %128 : vector<8x32xf32>
    %130 = arith.mulf %124, %127 : vector<8x32xf32>
    %131 = arith.addf %129, %130 : vector<8x32xf32>
    %c0_66 = arith.constant 0 : index
    %c0_67 = arith.constant 0 : index
    %132 = vector.load %arg7[%c0_66, %c0_67] : memref<8x32xf32, #tpu.memory_space<vmem>>, vector<8x32xf32>
    tpu.vector_store %arg7[%c0_66, %c0_67], %131 {strides = array<i32>} : memref<8x32xf32, #tpu.memory_space<vmem>>, vector<8x32xf32>,
    %133 = math.tanh %131 : vector<8x32xf32>
    %134 = arith.mulf %126, %133 : vector<8x32xf32>
    %c0_68 = arith.constant 0 : index
    %c0_69 = arith.constant 0 : index
    %135 = vector.load %arg6[%c0_68, %c0_69] : memref<8x32xf32, #tpu.memory_space<vmem>>, vector<8x32xf32>
    tpu.vector_store %arg6[%c0_68, %c0_69], %134 {strides = array<i32>} : memref<8x32xf32, #tpu.memory_space<vmem>>, vector<8x32xf32>,
    %c5_i32 = arith.constant 5 : i32
    %136 = arith.index_cast %c5_i32 : i32 to index
    %c0_70 = arith.constant 0 : index
    %c0_71 = arith.constant 0 : index
    %137 = vector.load %arg1[%136, %c0_70, %c0_71] : memref<8x8x128xf32, #tpu.memory_space<vmem>>, vector<1x8x128xf32>
    %138 = vector.shape_cast %137 : vector<1x8x128xf32> to vector<8x128xf32>
    %c0_72 = arith.constant 0 : index
    %c0_73 = arith.constant 0 : index
    %139 = vector.load %arg6[%c0_72, %c0_73] : memref<8x32xf32, #tpu.memory_space<vmem>>, vector<8x32xf32>
    %c0_74 = arith.constant 0 : index
    %c0_75 = arith.constant 0 : index
    %140 = vector.load %arg2[%c0_74, %c0_75] : memref<32x128xf32, #tpu.memory_space<vmem>>, vector<32x128xf32>
    %cst_76 = arith.constant dense<0.000000e+00> : vector<8x128xf32>
    %141 = tpu.matmul %139, %140, %cst_76 {dimension_numbers = #tpu.dot_dimension_numbers<[1], [0], [0], [1], [0, 0, 1, 1], [], []>} : vector<8x32xf32>, vector<32x128xf32>, vector<8x128xf32> -> vector<8x128xf32>
    %142 = arith.addf %138, %141 : vector<8x128xf32>
    %143 = arith.negf %142 : vector<8x128xf32>
    %144 = math.exp %143 : vector<8x128xf32>
    %cst_77 = arith.constant 1.000000e+00 : f32
    %145 = vector.broadcast %cst_77 : f32 to vector<8x128xf32>
    %146 = arith.addf %145, %144 : vector<8x128xf32>
    %147 = arith.divf %145, %146 : vector<8x128xf32>
    %148 = math.tanh %142 : vector<8x128xf32>
    %149 = arith.select %5, %147, %148 : vector<8x128xi1>, vector<8x128xf32>
    %150 = vector.extract_strided_slice %149 {offsets = [0, 0], sizes = [8, 32], strides = [1, 1]} : vector<8x128xf32> to vector<8x32xf32>
    %151 = vector.extract_strided_slice %149 {offsets = [0, 32], sizes = [8, 32], strides = [1, 1]} : vector<8x128xf32> to vector<8x32xf32>
    %152 = vector.extract_strided_slice %149 {offsets = [0, 64], sizes = [8, 32], strides = [1, 1]} : vector<8x128xf32> to vector<8x32xf32>
    %153 = vector.extract_strided_slice %149 {offsets = [0, 96], sizes = [8, 32], strides = [1, 1]} : vector<8x128xf32> to vector<8x32xf32>
    %c0_78 = arith.constant 0 : index
    %c0_79 = arith.constant 0 : index
    %154 = vector.load %arg7[%c0_78, %c0_79] : memref<8x32xf32, #tpu.memory_space<vmem>>, vector<8x32xf32>
    %155 = arith.mulf %151, %154 : vector<8x32xf32>
    %156 = arith.mulf %150, %153 : vector<8x32xf32>
    %157 = arith.addf %155, %156 : vector<8x32xf32>
    %c0_80 = arith.constant 0 : index
    %c0_81 = arith.constant 0 : index
    %158 = vector.load %arg7[%c0_80, %c0_81] : memref<8x32xf32, #tpu.memory_space<vmem>>, vector<8x32xf32>
    tpu.vector_store %arg7[%c0_80, %c0_81], %157 {strides = array<i32>} : memref<8x32xf32, #tpu.memory_space<vmem>>, vector<8x32xf32>,
    %159 = math.tanh %157 : vector<8x32xf32>
    %160 = arith.mulf %152, %159 : vector<8x32xf32>
    %c0_82 = arith.constant 0 : index
    %c0_83 = arith.constant 0 : index
    %161 = vector.load %arg6[%c0_82, %c0_83] : memref<8x32xf32, #tpu.memory_space<vmem>>, vector<8x32xf32>
    tpu.vector_store %arg6[%c0_82, %c0_83], %160 {strides = array<i32>} : memref<8x32xf32, #tpu.memory_space<vmem>>, vector<8x32xf32>,
    %c6_i32 = arith.constant 6 : i32
    %162 = arith.index_cast %c6_i32 : i32 to index
    %c0_84 = arith.constant 0 : index
    %c0_85 = arith.constant 0 : index
    %163 = vector.load %arg1[%162, %c0_84, %c0_85] : memref<8x8x128xf32, #tpu.memory_space<vmem>>, vector<1x8x128xf32>
    %164 = vector.shape_cast %163 : vector<1x8x128xf32> to vector<8x128xf32>
    %c0_86 = arith.constant 0 : index
    %c0_87 = arith.constant 0 : index
    %165 = vector.load %arg6[%c0_86, %c0_87] : memref<8x32xf32, #tpu.memory_space<vmem>>, vector<8x32xf32>
    %c0_88 = arith.constant 0 : index
    %c0_89 = arith.constant 0 : index
    %166 = vector.load %arg2[%c0_88, %c0_89] : memref<32x128xf32, #tpu.memory_space<vmem>>, vector<32x128xf32>
    %cst_90 = arith.constant dense<0.000000e+00> : vector<8x128xf32>
    %167 = tpu.matmul %165, %166, %cst_90 {dimension_numbers = #tpu.dot_dimension_numbers<[1], [0], [0], [1], [0, 0, 1, 1], [], []>} : vector<8x32xf32>, vector<32x128xf32>, vector<8x128xf32> -> vector<8x128xf32>
    %168 = arith.addf %164, %167 : vector<8x128xf32>
    %169 = arith.negf %168 : vector<8x128xf32>
    %170 = math.exp %169 : vector<8x128xf32>
    %cst_91 = arith.constant 1.000000e+00 : f32
    %171 = vector.broadcast %cst_91 : f32 to vector<8x128xf32>
    %172 = arith.addf %171, %170 : vector<8x128xf32>
    %173 = arith.divf %171, %172 : vector<8x128xf32>
    %174 = math.tanh %168 : vector<8x128xf32>
    %175 = arith.select %5, %173, %174 : vector<8x128xi1>, vector<8x128xf32>
    %176 = vector.extract_strided_slice %175 {offsets = [0, 0], sizes = [8, 32], strides = [1, 1]} : vector<8x128xf32> to vector<8x32xf32>
    %177 = vector.extract_strided_slice %175 {offsets = [0, 32], sizes = [8, 32], strides = [1, 1]} : vector<8x128xf32> to vector<8x32xf32>
    %178 = vector.extract_strided_slice %175 {offsets = [0, 64], sizes = [8, 32], strides = [1, 1]} : vector<8x128xf32> to vector<8x32xf32>
    %179 = vector.extract_strided_slice %175 {offsets = [0, 96], sizes = [8, 32], strides = [1, 1]} : vector<8x128xf32> to vector<8x32xf32>
    %c0_92 = arith.constant 0 : index
    %c0_93 = arith.constant 0 : index
    %180 = vector.load %arg7[%c0_92, %c0_93] : memref<8x32xf32, #tpu.memory_space<vmem>>, vector<8x32xf32>
    %181 = arith.mulf %177, %180 : vector<8x32xf32>
    %182 = arith.mulf %176, %179 : vector<8x32xf32>
    %183 = arith.addf %181, %182 : vector<8x32xf32>
    %c0_94 = arith.constant 0 : index
    %c0_95 = arith.constant 0 : index
    %184 = vector.load %arg7[%c0_94, %c0_95] : memref<8x32xf32, #tpu.memory_space<vmem>>, vector<8x32xf32>
    tpu.vector_store %arg7[%c0_94, %c0_95], %183 {strides = array<i32>} : memref<8x32xf32, #tpu.memory_space<vmem>>, vector<8x32xf32>,
    %185 = math.tanh %183 : vector<8x32xf32>
    %186 = arith.mulf %178, %185 : vector<8x32xf32>
    %c0_96 = arith.constant 0 : index
    %c0_97 = arith.constant 0 : index
    %187 = vector.load %arg6[%c0_96, %c0_97] : memref<8x32xf32, #tpu.memory_space<vmem>>, vector<8x32xf32>
    tpu.vector_store %arg6[%c0_96, %c0_97], %186 {strides = array<i32>} : memref<8x32xf32, #tpu.memory_space<vmem>>, vector<8x32xf32>,
    %c7_i32 = arith.constant 7 : i32
    %188 = arith.index_cast %c7_i32 : i32 to index
    %c0_98 = arith.constant 0 : index
    %c0_99 = arith.constant 0 : index
    %189 = vector.load %arg1[%188, %c0_98, %c0_99] : memref<8x8x128xf32, #tpu.memory_space<vmem>>, vector<1x8x128xf32>
    %190 = vector.shape_cast %189 : vector<1x8x128xf32> to vector<8x128xf32>
    %c0_100 = arith.constant 0 : index
    %c0_101 = arith.constant 0 : index
    %191 = vector.load %arg6[%c0_100, %c0_101] : memref<8x32xf32, #tpu.memory_space<vmem>>, vector<8x32xf32>
    %c0_102 = arith.constant 0 : index
    %c0_103 = arith.constant 0 : index
    %192 = vector.load %arg2[%c0_102, %c0_103] : memref<32x128xf32, #tpu.memory_space<vmem>>, vector<32x128xf32>
    %cst_104 = arith.constant dense<0.000000e+00> : vector<8x128xf32>
    %193 = tpu.matmul %191, %192, %cst_104 {dimension_numbers = #tpu.dot_dimension_numbers<[1], [0], [0], [1], [0, 0, 1, 1], [], []>} : vector<8x32xf32>, vector<32x128xf32>, vector<8x128xf32> -> vector<8x128xf32>
    %194 = arith.addf %190, %193 : vector<8x128xf32>
    %195 = arith.negf %194 : vector<8x128xf32>
    %196 = math.exp %195 : vector<8x128xf32>
    %cst_105 = arith.constant 1.000000e+00 : f32
    %197 = vector.broadcast %cst_105 : f32 to vector<8x128xf32>
    %198 = arith.addf %197, %196 : vector<8x128xf32>
    %199 = arith.divf %197, %198 : vector<8x128xf32>
    %200 = math.tanh %194 : vector<8x128xf32>
    %201 = arith.select %5, %199, %200 : vector<8x128xi1>, vector<8x128xf32>
    %202 = vector.extract_strided_slice %201 {offsets = [0, 0], sizes = [8, 32], strides = [1, 1]} : vector<8x128xf32> to vector<8x32xf32>
    %203 = vector.extract_strided_slice %201 {offsets = [0, 32], sizes = [8, 32], strides = [1, 1]} : vector<8x128xf32> to vector<8x32xf32>
    %204 = vector.extract_strided_slice %201 {offsets = [0, 64], sizes = [8, 32], strides = [1, 1]} : vector<8x128xf32> to vector<8x32xf32>
    %205 = vector.extract_strided_slice %201 {offsets = [0, 96], sizes = [8, 32], strides = [1, 1]} : vector<8x128xf32> to vector<8x32xf32>
    %c0_106 = arith.constant 0 : index
    %c0_107 = arith.constant 0 : index
    %206 = vector.load %arg7[%c0_106, %c0_107] : memref<8x32xf32, #tpu.memory_space<vmem>>, vector<8x32xf32>
    %207 = arith.mulf %203, %206 : vector<8x32xf32>
    %208 = arith.mulf %202, %205 : vector<8x32xf32>
    %209 = arith.addf %207, %208 : vector<8x32xf32>
    %c0_108 = arith.constant 0 : index
    %c0_109 = arith.constant 0 : index
    %210 = vector.load %arg7[%c0_108, %c0_109] : memref<8x32xf32, #tpu.memory_space<vmem>>, vector<8x32xf32>
    tpu.vector_store %arg7[%c0_108, %c0_109], %209 {strides = array<i32>} : memref<8x32xf32, #tpu.memory_space<vmem>>, vector<8x32xf32>,
    %211 = math.tanh %209 : vector<8x32xf32>
    %212 = arith.mulf %204, %211 : vector<8x32xf32>
    %c0_110 = arith.constant 0 : index
    %c0_111 = arith.constant 0 : index
    %213 = vector.load %arg6[%c0_110, %c0_111] : memref<8x32xf32, #tpu.memory_space<vmem>>, vector<8x32xf32>
    tpu.vector_store %arg6[%c0_110, %c0_111], %212 {strides = array<i32>} : memref<8x32xf32, #tpu.memory_space<vmem>>, vector<8x32xf32>,
    %c8_i32 = arith.constant 8 : i32
    %c0_i32_112 = arith.constant 0 : i32
    %214 = arith.cmpi eq, %arg0, %c0_i32_112 : i32
    %215 = arith.extui %214 : i1 to i32
    %c0_i32_113 = arith.constant 0 : i32
    %216 = arith.cmpi ne, %215, %c0_i32_113 : i32
    scf.if %216 {
      %c0_114 = arith.constant 0 : index
      %c0_115 = arith.constant 0 : index
      %217 = vector.load %arg6[%c0_114, %c0_115] : memref<8x32xf32, #tpu.memory_space<vmem>>, vector<8x32xf32>
      %c0_116 = arith.constant 0 : index
      %c0_117 = arith.constant 0 : index
      %218 = vector.load %arg3[%c0_116, %c0_117] : memref<32x1xf32, #tpu.memory_space<vmem>>, vector<32x1xf32>
      %cst_118 = arith.constant dense<0.000000e+00> : vector<8x1xf32>
      %219 = tpu.matmul %217, %218, %cst_118 {dimension_numbers = #tpu.dot_dimension_numbers<[1], [0], [0], [1], [0, 0, 1, 1], [], []>} : vector<8x32xf32>, vector<32x1xf32>, vector<8x1xf32> -> vector<8x1xf32>
      %c0_119 = arith.constant 0 : index
      %c0_120 = arith.constant 0 : index
      %220 = memref.load %arg4[%c0_119, %c0_120] : memref<1x1xf32, #tpu.memory_space<smem>>
      %221 = vector.broadcast %220 : f32 to vector<8x1xf32>
      %222 = arith.addf %219, %221 : vector<8x1xf32>
      %c0_121 = arith.constant 0 : index
      %c0_122 = arith.constant 0 : index
      %223 = vector.load %arg5[%c0_121, %c0_122] : memref<8x1xf32, #tpu.memory_space<vmem>>, vector<8x1xf32>
      tpu.vector_store %arg5[%c0_121, %c0_122], %222 {strides = array<i32>} : memref<8x1xf32, #tpu.memory_space<vmem>>, vector<8x1xf32>,
    } else {
    }
    return
  }
  func.func @transform_0(%arg0: i32) -> (i32, i32, i32) {
    %c0_i32 = arith.constant 0 : i32
    %c0_i32_0 = arith.constant 0 : i32
    %c0_i32_1 = arith.constant 0 : i32
    return %arg0, %c0_i32, %c0_i32_0 : i32, i32, i32
  }
  func.func @transform_1(%arg0: i32) -> (i32, i32) {
    %c0_i32 = arith.constant 0 : i32
    %c0_i32_0 = arith.constant 0 : i32
    %c0_i32_1 = arith.constant 0 : i32
    return %c0_i32, %c0_i32_0 : i32, i32
  }
  func.func @transform_2(%arg0: i32) -> (i32, i32) {
    %c0_i32 = arith.constant 0 : i32
    %c0_i32_0 = arith.constant 0 : i32
    %c0_i32_1 = arith.constant 0 : i32
    return %c0_i32, %c0_i32_0 : i32, i32
  }
  func.func @transform_3(%arg0: i32) -> (i32, i32) {
    %c0_i32 = arith.constant 0 : i32
    %c0_i32_0 = arith.constant 0 : i32
    %c0_i32_1 = arith.constant 0 : i32
    return %c0_i32, %c0_i32_0 : i32, i32
  }
  func.func @transform_4(%arg0: i32) -> (i32, i32) {
    %c0_i32 = arith.constant 0 : i32
    %c0_i32_0 = arith.constant 0 : i32
    %c0_i32_1 = arith.constant 0 : i32
    return %c0_i32, %c0_i32_0 : i32, i32
  }
}

</mosaic_0001>

<llo_original>
// kernel: tpu_custom_call.1
$region0: #{tpu_custom_call.1}
  #allocation0 [shape = 'u32[]', space=smem, size = 0x4, offset = 0x4, fixed_abs, tag = 'smem constant byte address 0x4 - core index']
  #allocation1 [shape = 'u32[72,128]{1,0:T(1,128)}', space=vmem, size = 0x9000, scoped, tag = 'internal scratch']
  #allocation2 [shape = 'f32[8,32]{1,0:T(8,128)}', space=vmem, size = 0x1000, scoped, tag = 'scratch operand']
  #allocation3 [shape = 'f32[8,32]{1,0:T(8,128)}', space=vmem, size = 0x1000, scoped, tag = 'scratch operand']
  #allocation4 [shape = 'f32[1,1]{1,0:T(1,128)S(6)}', space=smem, size = 0x200, scoped, tag = 'scoped memory for tpu_custom_call.1']
  %s0 = inlined_call_operand.hbm [shape: f32[8,8,128], index: 0, kind: input, shape index: {}]
  %s1 = inlined_call_operand.vmem [shape: f32[32,128], index: 1, kind: input, shape index: {}]
  %s2 = inlined_call_operand.vmem [shape: f32[32,1], index: 2, kind: input, shape index: {}]
  %s3 = inlined_call_operand.<no memory space> [shape: f32[1,1], index: 3, kind: input, shape index: {}]
  %s4 = inlined_call_operand.vmem [shape: f32[8,1], index: 4, kind: output, shape index: {}]
  %s5 = sld [smem:[#allocation0]]
  $region38: #{tpu_custom_call.1} parent=0
    _
  %s7 = ssub.s32 1, %s5
  %s8 = scalar_select 0, %s7, %s5
  %9 = sst [smem:[#allocation4]] %s3
  $region1: #{tpu_custom_call.1} parent=0
    #allocation5 [shape = 'u8[32768]{0}', space=vmem, size = 0x8000, scoped, tag = 'input window, operand 0, single buffered']
    #allocation6 [shape = 's32[1]{0}', space=sflag, size = 0x4, scoped, tag = 'scoped memory for tpu_custom_call.1']
    %10 = vsyncpa [#allocation6], 0
    // Predicated region
    $region2: #{tpu_custom_call.1} parent=1 // pred_check
      _
    $region3: #{tpu_custom_call.1} parent=1 // pred_check_branch
      %12 = sbr.rel (0) target = $region5
    $region4: #{tpu_custom_call.1} parent=1 // pred_region
      %14 = vsyncadd [#allocation6], 0
      %s15 = sshll.u32 %s0, 4
      %s16 = int_to_ptr.hbm [resolvable:$true] %s15
      %s17 = sshll.u32 [#allocation5], 4
      %s18 = int_to_ptr.vmem [resolvable:$true] %s17
      %23 = dma.hbm_to_vmem [thread:$0]  %s16, 1024, %s18, [#allocation6], 128, 128, 8
    $region5: #{tpu_custom_call.1} parent=1 // pred_fallthru
      _
    // Predicated region
    $region6: #{tpu_custom_call.1} parent=1 // pred_check
      _
    $region7: #{tpu_custom_call.1} parent=1 // pred_check_branch
      %25 = sbr.rel (0) target = $region9
    $region8: #{tpu_custom_call.1} parent=1 // pred_region
      _
    $region9: #{tpu_custom_call.1} parent=1 // pred_fallthru
      _
    // Predicated region
    $region10: #{tpu_custom_call.1} parent=1 // pred_check
      _
    $region11: #{tpu_custom_call.1} parent=1 // pred_check_branch
      %27 = sbr.rel (0) target = $region13
    $region12: #{tpu_custom_call.1} parent=1 // pred_region
      _
    $region13: #{tpu_custom_call.1} parent=1 // pred_fallthru
      _
    // Predicated region
    $region14: #{tpu_custom_call.1} parent=1 // pred_check
      _
    $region15: #{tpu_custom_call.1} parent=1 // pred_check_branch
      %29 = sbr.rel (0) target = $region17
    $region16: #{tpu_custom_call.1} parent=1 // pred_region
      _
    $region17: #{tpu_custom_call.1} parent=1 // pred_fallthru
      _
    // Predicated region
    $region18: #{tpu_custom_call.1} parent=1 // pred_check
      _
    $region19: #{tpu_custom_call.1} parent=1 // pred_check_branch
      %31 = sbr.rel (0) target = $region21
    $region20: #{tpu_custom_call.1} parent=1 // pred_region
      %33 = dma.done [#allocation6], 1024
    $region21: #{tpu_custom_call.1} parent=1 // pred_fallthru
      _
    %p34 = scmp.eq.s32.totalorder 0, 0
    // Predicated region
    $region22: #{tpu_custom_call.1} parent=1 // pred_check
      %p35 = pneg %p34
    $region23: #{tpu_custom_call.1} parent=1 // pred_check_branch
      %37 = sbr.rel (%p35) target = $region25
    $region24: #{tpu_custom_call.1} parent=1 // pred_region
      %vm38 = vcmask 261120
      %39 = vst.msk [vmem:[#allocation2] sm:$0xff] %vm38, 0.0
      %40 = vst.msk [vmem:[#allocation3] sm:$0xff] %vm38, 0.0
    $region25: #{tpu_custom_call.1} parent=1 // pred_fallthru
      _
    %v41 = vlaneseq
    %v42 = vand.u32 %v41, 127
    %vm43 = vcmp.lt.s32.totalorder %v42, 96
    %v44 = vld [vmem:[#allocation5] sm:$0xff]
    %v45 = vld [vmem:[#allocation2] sm:$0xff]
    %v46 = vld [vmem:[%s1] sm:$0xff]
    %v47 = vld [vmem:[%s1 + $0x8] sm:$0xff]
    %v48 = vld [vmem:[%s1 + $0x10] sm:$0xff]
    %v49 = vld [vmem:[%s1 + $0x18] sm:$0xff]
    %vm50 = vcmask 261120
    %v52 = vsel %vm50, %v45, 0
    %54 = vmatpush.msra.mxu0 0.0
    %55 = vmatpush.msra.mxu0 0.0
    %56 = vmatpush.msra.mxu0 0.0
    %57 = vmatpush.msra.mxu0 0.0
    %58 = vmatpush.msra.mxu0 0.0
    %59 = vmatpush.msra.mxu0 0.0
    %60 = vmatpush.msra.mxu0 0.0
    %61 = vmatpush.msra.mxu0 0.0
    %62 = vmatpush.msra.mxu0 0.0
    %63 = vmatpush.msra.mxu0 0.0
    %64 = vmatpush.msra.mxu0 0.0
    %65 = vmatpush.msra.mxu0 0.0
    %66 = vmatpush.msra.mxu0 %v49
    %67 = vmatpush.msra.mxu0 %v48
    %68 = vmatpush.msra.mxu0 %v47
    %69 = vmatpush.msra.mxu0 %v46
    %70 = vmatmul.f32.gmra.mxu0 %v52
    %v71 = vpop.f32.mrf.mxu0
    %v72 = vadd.f32 0.0, %v71
    %73 = vdwg.mxu0
    %v74 = vadd.f32 %v44, %v72
    %v75 = vxor.u32 %v74, 2147483648
    %v76 = vmul.f32 %v75, 1.442695
    %v77 = vpow.pop %v76
    %v78 = vadd.f32 %v77, 1.0
    %v79 = vrcp.pop %v78
    %v80 = vmul.f32 %v78, %v79
    %v81 = vsub.f32 1.0, %v80
    %v82 = vmul.f32 %v79, %v81
    %v83 = vadd.f32 %v79, %v82
    %vm84 = vweird.f32 %v78
    %vm85 = vweird.f32 %v79
    %vm86 = vmor %vm84, %vm85
    %v87 = vsel %vm86, %v79, %v83
    %v88 = vand.u32 2147483647, %v78
    %vm89 = vcmp.eq.f32.partialorder %v88, 8.507059e+37
    %v90 = vand.u32 %v78, 2147483648
    %v91 = vor.u32 1.1754944e-38, %v90
    %v92 = vsel %vm89, %v91, %v87
    %v93 = vmul.f32 1.0, %v92
    %v94 = vtanh.pop %v74
    %v95 = vsel %vm43, %v93, %v94
    %v96 = vld [vmem:[#allocation3] sm:$0xff]
    %98 = vrot.lane.b32.xlu0 %v96, 32
    %v99 = vpop.permute.xlu0 %98
    %v101 = vmul.f32 %v95, %v99
    %103 = vrot.lane.b32.xlu0 %v95, 32
    %v104 = vpop.permute.xlu0 %103
    %v106 = vmul.f32 %v95, %v104
    %108 = vrot.lane.b32.xlu0 %v106, 32
    %v109 = vpop.permute.xlu0 %108
    %v111 = vadd.f32 %v101, %v109
    %113 = vrot.lane.b32.xlu0 %v111, 96
    %v114 = vpop.permute.xlu0 %113
    %116 = vst.msk [vmem:[#allocation3] sm:$0xff] %vm50, %v114
    %v117 = vtanh.pop %v111
    %119 = vrot.lane.b32.xlu0 %v117, 32
    %v120 = vpop.permute.xlu0 %119
    %v122 = vmul.f32 %v95, %v120
    %124 = vrot.lane.b32.xlu0 %v122, 64
    %v125 = vpop.permute.xlu0 %124
    %127 = vst.msk [vmem:[#allocation2] sm:$0xff] %vm50, %v125
    %s128 = scalar_lea.vmem [#allocation5], 8
    %v129 = vld [vmem:[%s128] sm:$0xff]
    %v130 = vld [vmem:[#allocation2] sm:$0xff]
    %v131 = vld [vmem:[%s1] sm:$0xff]
    %v132 = vld [vmem:[%s1 + $0x8] sm:$0xff]
    %v133 = vld [vmem:[%s1 + $0x10] sm:$0xff]
    %v134 = vld [vmem:[%s1 + $0x18] sm:$0xff]
    %v136 = vsel %vm50, %v130, 0
    %138 = vmatpush.msra.mxu0 0.0
    %139 = vmatpush.msra.mxu0 0.0
    %140 = vmatpush.msra.mxu0 0.0
    %141 = vmatpush.msra.mxu0 0.0
    %142 = vmatpush.msra.mxu0 0.0
    %143 = vmatpush.msra.mxu0 0.0
    %144 = vmatpush.msra.mxu0 0.0
    %145 = vmatpush.msra.mxu0 0.0
    %146 = vmatpush.msra.mxu0 0.0
    %147 = vmatpush.msra.mxu0 0.0
    %148 = vmatpush.msra.mxu0 0.0
    %149 = vmatpush.msra.mxu0 0.0
    %150 = vmatpush.msra.mxu0 %v134
    %151 = vmatpush.msra.mxu0 %v133
    %152 = vmatpush.msra.mxu0 %v132
    %153 = vmatpush.msra.mxu0 %v131
    %154 = vmatmul.f32.gmra.mxu0 %v136
    %v155 = vpop.f32.mrf.mxu0
    %v156 = vadd.f32 0.0, %v155
    %157 = vdwg.mxu0
    %v158 = vadd.f32 %v129, %v156
    %v159 = vxor.u32 %v158, 2147483648
    %v160 = vmul.f32 %v159, 1.442695
    %v161 = vpow.pop %v160
    %v162 = vadd.f32 %v161, 1.0
    %v163 = vrcp.pop %v162
    %v164 = vmul.f32 %v162, %v163
    %v165 = vsub.f32 1.0, %v164
    %v166 = vmul.f32 %v163, %v165
    %v167 = vadd.f32 %v163, %v166
    %vm168 = vweird.f32 %v162
    %vm169 = vweird.f32 %v163
    %vm170 = vmor %vm168, %vm169
    %v171 = vsel %vm170, %v163, %v167
    %v172 = vand.u32 2147483647, %v162
    %vm173 = vcmp.eq.f32.partialorder %v172, 8.507059e+37
    %v174 = vand.u32 %v162, 2147483648
    %v175 = vor.u32 1.1754944e-38, %v174
    %v176 = vsel %vm173, %v175, %v171
    %v177 = vmul.f32 1.0, %v176
    %v178 = vtanh.pop %v158
    %v179 = vsel %vm43, %v177, %v178
    %v180 = vld [vmem:[#allocation3] sm:$0xff]
    %182 = vrot.lane.b32.xlu0 %v180, 32
    %v183 = vpop.permute.xlu0 %182
    %v185 = vmul.f32 %v179, %v183
    %187 = vrot.lane.b32.xlu0 %v179, 32
    %v188 = vpop.permute.xlu0 %187
    %v190 = vmul.f32 %v179, %v188
    %192 = vrot.lane.b32.xlu0 %v190, 32
    %v193 = vpop.permute.xlu0 %192
    %v195 = vadd.f32 %v185, %v193
    %197 = vrot.lane.b32.xlu0 %v195, 96
    %v198 = vpop.permute.xlu0 %197
    %200 = vst.msk [vmem:[#allocation3] sm:$0xff] %vm50, %v198
    %v201 = vtanh.pop %v195
    %203 = vrot.lane.b32.xlu0 %v201, 32
    %v204 = vpop.permute.xlu0 %203
    %v206 = vmul.f32 %v179, %v204
    %208 = vrot.lane.b32.xlu0 %v206, 64
    %v209 = vpop.permute.xlu0 %208
    %211 = vst.msk [vmem:[#allocation2] sm:$0xff] %vm50, %v209
    %s212 = scalar_lea.vmem [#allocation5], 16
    %v213 = vld [vmem:[%s212] sm:$0xff]
    %v214 = vld [vmem:[#allocation2] sm:$0xff]
    %v215 = vld [vmem:[%s1] sm:$0xff]
    %v216 = vld [vmem:[%s1 + $0x8] sm:$0xff]
    %v217 = vld [vmem:[%s1 + $0x10] sm:$0xff]
    %v218 = vld [vmem:[%s1 + $0x18] sm:$0xff]
    %v220 = vsel %vm50, %v214, 0
    %222 = vmatpush.msra.mxu0 0.0
    %223 = vmatpush.msra.mxu0 0.0
    %224 = vmatpush.msra.mxu0 0.0
    %225 = vmatpush.msra.mxu0 0.0
    %226 = vmatpush.msra.mxu0 0.0
    %227 = vmatpush.msra.mxu0 0.0
    %228 = vmatpush.msra.mxu0 0.0
    %229 = vmatpush.msra.mxu0 0.0
    %230 = vmatpush.msra.mxu0 0.0
    %231 = vmatpush.msra.mxu0 0.0
    %232 = vmatpush.msra.mxu0 0.0
    %233 = vmatpush.msra.mxu0 0.0
    %234 = vmatpush.msra.mxu0 %v218
    %235 = vmatpush.msra.mxu0 %v217
    %236 = vmatpush.msra.mxu0 %v216
    %237 = vmatpush.msra.mxu0 %v215
    %238 = vmatmul.f32.gmra.mxu0 %v220
    %v239 = vpop.f32.mrf.mxu0
    %v240 = vadd.f32 0.0, %v239
    %241 = vdwg.mxu0
    %v242 = vadd.f32 %v213, %v240
    %v243 = vxor.u32 %v242, 2147483648
    %v244 = vmul.f32 %v243, 1.442695
    %v245 = vpow.pop %v244
    %v246 = vadd.f32 %v245, 1.0
    %v247 = vrcp.pop %v246
    %v248 = vmul.f32 %v246, %v247
    %v249 = vsub.f32 1.0, %v248
    %v250 = vmul.f32 %v247, %v249
    %v251 = vadd.f32 %v247, %v250
    %vm252 = vweird.f32 %v246
    %vm253 = vweird.f32 %v247
    %vm254 = vmor %vm252, %vm253
    %v255 = vsel %vm254, %v247, %v251
    %v256 = vand.u32 2147483647, %v246
    %vm257 = vcmp.eq.f32.partialorder %v256, 8.507059e+37
    %v258 = vand.u32 %v246, 2147483648
    %v259 = vor.u32 1.1754944e-38, %v258
    %v260 = vsel %vm257, %v259, %v255
    %v261 = vmul.f32 1.0, %v260
    %v262 = vtanh.pop %v242
    %v263 = vsel %vm43, %v261, %v262
    %v264 = vld [vmem:[#allocation3] sm:$0xff]
    %266 = vrot.lane.b32.xlu0 %v264, 32
    %v267 = vpop.permute.xlu0 %266
    %v269 = vmul.f32 %v263, %v267
    %271 = vrot.lane.b32.xlu0 %v263, 32
    %v272 = vpop.permute.xlu0 %271
    %v274 = vmul.f32 %v263, %v272
    %276 = vrot.lane.b32.xlu0 %v274, 32
    %v277 = vpop.permute.xlu0 %276
    %v279 = vadd.f32 %v269, %v277
    %281 = vrot.lane.b32.xlu0 %v279, 96
    %v282 = vpop.permute.xlu0 %281
    %284 = vst.msk [vmem:[#allocation3] sm:$0xff] %vm50, %v282
    %v285 = vtanh.pop %v279
    %287 = vrot.lane.b32.xlu0 %v285, 32
    %v288 = vpop.permute.xlu0 %287
    %v290 = vmul.f32 %v263, %v288
    %292 = vrot.lane.b32.xlu0 %v290, 64
    %v293 = vpop.permute.xlu0 %292
    %295 = vst.msk [vmem:[#allocation2] sm:$0xff] %vm50, %v293
    %s296 = scalar_lea.vmem [#allocation5], 24
    %v297 = vld [vmem:[%s296] sm:$0xff]
    %v298 = vld [vmem:[#allocation2] sm:$0xff]
    %v299 = vld [vmem:[%s1] sm:$0xff]
    %v300 = vld [vmem:[%s1 + $0x8] sm:$0xff]
    %v301 = vld [vmem:[%s1 + $0x10] sm:$0xff]
    %v302 = vld [vmem:[%s1 + $0x18] sm:$0xff]
    %v304 = vsel %vm50, %v298, 0
    %306 = vmatpush.msra.mxu0 0.0
    %307 = vmatpush.msra.mxu0 0.0
    %308 = vmatpush.msra.mxu0 0.0
    %309 = vmatpush.msra.mxu0 0.0
    %310 = vmatpush.msra.mxu0 0.0
    %311 = vmatpush.msra.mxu0 0.0
    %312 = vmatpush.msra.mxu0 0.0
    %313 = vmatpush.msra.mxu0 0.0
    %314 = vmatpush.msra.mxu0 0.0
    %315 = vmatpush.msra.mxu0 0.0
    %316 = vmatpush.msra.mxu0 0.0
    %317 = vmatpush.msra.mxu0 0.0
    %318 = vmatpush.msra.mxu0 %v302
    %319 = vmatpush.msra.mxu0 %v301
    %320 = vmatpush.msra.mxu0 %v300
    %321 = vmatpush.msra.mxu0 %v299
    %322 = vmatmul.f32.gmra.mxu0 %v304
    %v323 = vpop.f32.mrf.mxu0
    %v324 = vadd.f32 0.0, %v323
    %325 = vdwg.mxu0
    %v326 = vadd.f32 %v297, %v324
    %v327 = vxor.u32 %v326, 2147483648
    %v328 = vmul.f32 %v327, 1.442695
    %v329 = vpow.pop %v328
    %v330 = vadd.f32 %v329, 1.0
    %v331 = vrcp.pop %v330
    %v332 = vmul.f32 %v330, %v331
    %v333 = vsub.f32 1.0, %v332
    %v334 = vmul.f32 %v331, %v333
    %v335 = vadd.f32 %v331, %v334
    %vm336 = vweird.f32 %v330
    %vm337 = vweird.f32 %v331
    %vm338 = vmor %vm336, %vm337
    %v339 = vsel %vm338, %v331, %v335
    %v340 = vand.u32 2147483647, %v330
    %vm341 = vcmp.eq.f32.partialorder %v340, 8.507059e+37
    %v342 = vand.u32 %v330, 2147483648
    %v343 = vor.u32 1.1754944e-38, %v342
    %v344 = vsel %vm341, %v343, %v339
    %v345 = vmul.f32 1.0, %v344
    %v346 = vtanh.pop %v326
    %v347 = vsel %vm43, %v345, %v346
    %v348 = vld [vmem:[#allocation3] sm:$0xff]
    %350 = vrot.lane.b32.xlu0 %v348, 32
    %v351 = vpop.permute.xlu0 %350
    %v353 = vmul.f32 %v347, %v351
    %355 = vrot.lane.b32.xlu0 %v347, 32
    %v356 = vpop.permute.xlu0 %355
    %v358 = vmul.f32 %v347, %v356
    %360 = vrot.lane.b32.xlu0 %v358, 32
    %v361 = vpop.permute.xlu0 %360
    %v363 = vadd.f32 %v353, %v361
    %365 = vrot.lane.b32.xlu0 %v363, 96
    %v366 = vpop.permute.xlu0 %365
    %368 = vst.msk [vmem:[#allocation3] sm:$0xff] %vm50, %v366
    %v369 = vtanh.pop %v363
    %371 = vrot.lane.b32.xlu0 %v369, 32
    %v372 = vpop.permute.xlu0 %371
    %v374 = vmul.f32 %v347, %v372
    %376 = vrot.lane.b32.xlu0 %v374, 64
    %v377 = vpop.permute.xlu0 %376
    %379 = vst.msk [vmem:[#allocation2] sm:$0xff] %vm50, %v377
    %s380 = scalar_lea.vmem [#allocation5], 32
    %v381 = vld [vmem:[%s380] sm:$0xff]
    %v382 = vld [vmem:[#allocation2] sm:$0xff]
    %v383 = vld [vmem:[%s1] sm:$0xff]
    %v384 = vld [vmem:[%s1 + $0x8] sm:$0xff]
    %v385 = vld [vmem:[%s1 + $0x10] sm:$0xff]
    %v386 = vld [vmem:[%s1 + $0x18] sm:$0xff]
    %v388 = vsel %vm50, %v382, 0
    %390 = vmatpush.msra.mxu0 0.0
    %391 = vmatpush.msra.mxu0 0.0
    %392 = vmatpush.msra.mxu0 0.0
    %393 = vmatpush.msra.mxu0 0.0
    %394 = vmatpush.msra.mxu0 0.0
    %395 = vmatpush.msra.mxu0 0.0
    %396 = vmatpush.msra.mxu0 0.0
    %397 = vmatpush.msra.mxu0 0.0
    %398 = vmatpush.msra.mxu0 0.0
    %399 = vmatpush.msra.mxu0 0.0
    %400 = vmatpush.msra.mxu0 0.0
    %401 = vmatpush.msra.mxu0 0.0
    %402 = vmatpush.msra.mxu0 %v386
    %403 = vmatpush.msra.mxu0 %v385
    %404 = vmatpush.msra.mxu0 %v384
    %405 = vmatpush.msra.mxu0 %v383
    %406 = vmatmul.f32.gmra.mxu0 %v388
    %v407 = vpop.f32.mrf.mxu0
    %v408 = vadd.f32 0.0, %v407
    %409 = vdwg.mxu0
    %v410 = vadd.f32 %v381, %v408
    %v411 = vxor.u32 %v410, 2147483648
    %v412 = vmul.f32 %v411, 1.442695
    %v413 = vpow.pop %v412
    %v414 = vadd.f32 %v413, 1.0
    %v415 = vrcp.pop %v414
    %v416 = vmul.f32 %v414, %v415
    %v417 = vsub.f32 1.0, %v416
    %v418 = vmul.f32 %v415, %v417
    %v419 = vadd.f32 %v415, %v418
    %vm420 = vweird.f32 %v414
    %vm421 = vweird.f32 %v415
    %vm422 = vmor %vm420, %vm421
    %v423 = vsel %vm422, %v415, %v419
    %v424 = vand.u32 2147483647, %v414
    %vm425 = vcmp.eq.f32.partialorder %v424, 8.507059e+37
    %v426 = vand.u32 %v414, 2147483648
    %v427 = vor.u32 1.1754944e-38, %v426
    %v428 = vsel %vm425, %v427, %v423
    %v429 = vmul.f32 1.0, %v428
    %v430 = vtanh.pop %v410
    %v431 = vsel %vm43, %v429, %v430
    %v432 = vld [vmem:[#allocation3] sm:$0xff]
    %434 = vrot.lane.b32.xlu0 %v432, 32
    %v435 = vpop.permute.xlu0 %434
    %v437 = vmul.f32 %v431, %v435
    %439 = vrot.lane.b32.xlu0 %v431, 32
    %v440 = vpop.permute.xlu0 %439
    %v442 = vmul.f32 %v431, %v440
    %444 = vrot.lane.b32.xlu0 %v442, 32
    %v445 = vpop.permute.xlu0 %444
    %v447 = vadd.f32 %v437, %v445
    %449 = vrot.lane.b32.xlu0 %v447, 96
    %v450 = vpop.permute.xlu0 %449
    %452 = vst.msk [vmem:[#allocation3] sm:$0xff] %vm50, %v450
    %v453 = vtanh.pop %v447
    %455 = vrot.lane.b32.xlu0 %v453, 32
    %v456 = vpop.permute.xlu0 %455
    %v458 = vmul.f32 %v431, %v456
    %460 = vrot.lane.b32.xlu0 %v458, 64
    %v461 = vpop.permute.xlu0 %460
    %463 = vst.msk [vmem:[#allocation2] sm:$0xff] %vm50, %v461
    %s464 = scalar_lea.vmem [#allocation5], 40
    %v465 = vld [vmem:[%s464] sm:$0xff]
    %v466 = vld [vmem:[#allocation2] sm:$0xff]
    %v467 = vld [vmem:[%s1] sm:$0xff]
    %v468 = vld [vmem:[%s1 + $0x8] sm:$0xff]
    %v469 = vld [vmem:[%s1 + $0x10] sm:$0xff]
    %v470 = vld [vmem:[%s1 + $0x18] sm:$0xff]
    %v472 = vsel %vm50, %v466, 0
    %474 = vmatpush.msra.mxu0 0.0
    %475 = vmatpush.msra.mxu0 0.0
    %476 = vmatpush.msra.mxu0 0.0
    %477 = vmatpush.msra.mxu0 0.0
    %478 = vmatpush.msra.mxu0 0.0
    %479 = vmatpush.msra.mxu0 0.0
    %480 = vmatpush.msra.mxu0 0.0
    %481 = vmatpush.msra.mxu0 0.0
    %482 = vmatpush.msra.mxu0 0.0
    %483 = vmatpush.msra.mxu0 0.0
    %484 = vmatpush.msra.mxu0 0.0
    %485 = vmatpush.msra.mxu0 0.0
    %486 = vmatpush.msra.mxu0 %v470
    %487 = vmatpush.msra.mxu0 %v469
    %488 = vmatpush.msra.mxu0 %v468
    %489 = vmatpush.msra.mxu0 %v467
    %490 = vmatmul.f32.gmra.mxu0 %v472
    %v491 = vpop.f32.mrf.mxu0
    %v492 = vadd.f32 0.0, %v491
    %493 = vdwg.mxu0
    %v494 = vadd.f32 %v465, %v492
    %v495 = vxor.u32 %v494, 2147483648
    %v496 = vmul.f32 %v495, 1.442695
    %v497 = vpow.pop %v496
    %v498 = vadd.f32 %v497, 1.0
    %v499 = vrcp.pop %v498
    %v500 = vmul.f32 %v498, %v499
    %v501 = vsub.f32 1.0, %v500
    %v502 = vmul.f32 %v499, %v501
    %v503 = vadd.f32 %v499, %v502
    %vm504 = vweird.f32 %v498
    %vm505 = vweird.f32 %v499
    %vm506 = vmor %vm504, %vm505
    %v507 = vsel %vm506, %v499, %v503
    %v508 = vand.u32 2147483647, %v498
    %vm509 = vcmp.eq.f32.partialorder %v508, 8.507059e+37
    %v510 = vand.u32 %v498, 2147483648
    %v511 = vor.u32 1.1754944e-38, %v510
    %v512 = vsel %vm509, %v511, %v507
    %v513 = vmul.f32 1.0, %v512
    %v514 = vtanh.pop %v494
    %v515 = vsel %vm43, %v513, %v514
    %v516 = vld [vmem:[#allocation3] sm:$0xff]
    %518 = vrot.lane.b32.xlu0 %v516, 32
    %v519 = vpop.permute.xlu0 %518
    %v521 = vmul.f32 %v515, %v519
    %523 = vrot.lane.b32.xlu0 %v515, 32
    %v524 = vpop.permute.xlu0 %523
    %v526 = vmul.f32 %v515, %v524
    %528 = vrot.lane.b32.xlu0 %v526, 32
    %v529 = vpop.permute.xlu0 %528
    %v531 = vadd.f32 %v521, %v529
    %533 = vrot.lane.b32.xlu0 %v531, 96
    %v534 = vpop.permute.xlu0 %533
    %536 = vst.msk [vmem:[#allocation3] sm:$0xff] %vm50, %v534
    %v537 = vtanh.pop %v531
    %539 = vrot.lane.b32.xlu0 %v537, 32
    %v540 = vpop.permute.xlu0 %539
    %v542 = vmul.f32 %v515, %v540
    %544 = vrot.lane.b32.xlu0 %v542, 64
    %v545 = vpop.permute.xlu0 %544
    %547 = vst.msk [vmem:[#allocation2] sm:$0xff] %vm50, %v545
    %s548 = scalar_lea.vmem [#allocation5], 48
    %v549 = vld [vmem:[%s548] sm:$0xff]
    %v550 = vld [vmem:[#allocation2] sm:$0xff]
    %v551 = vld [vmem:[%s1] sm:$0xff]
    %v552 = vld [vmem:[%s1 + $0x8] sm:$0xff]
    %v553 = vld [vmem:[%s1 + $0x10] sm:$0xff]
    %v554 = vld [vmem:[%s1 + $0x18] sm:$0xff]
    %v556 = vsel %vm50, %v550, 0
    %558 = vmatpush.msra.mxu0 0.0
    %559 = vmatpush.msra.mxu0 0.0
    %560 = vmatpush.msra.mxu0 0.0
    %561 = vmatpush.msra.mxu0 0.0
    %562 = vmatpush.msra.mxu0 0.0
    %563 = vmatpush.msra.mxu0 0.0
    %564 = vmatpush.msra.mxu0 0.0
    %565 = vmatpush.msra.mxu0 0.0
    %566 = vmatpush.msra.mxu0 0.0
    %567 = vmatpush.msra.mxu0 0.0
    %568 = vmatpush.msra.mxu0 0.0
    %569 = vmatpush.msra.mxu0 0.0
    %570 = vmatpush.msra.mxu0 %v554
    %571 = vmatpush.msra.mxu0 %v553
    %572 = vmatpush.msra.mxu0 %v552
    %573 = vmatpush.msra.mxu0 %v551
    %574 = vmatmul.f32.gmra.mxu0 %v556
    %v575 = vpop.f32.mrf.mxu0
    %v576 = vadd.f32 0.0, %v575
    %577 = vdwg.mxu0
    %v578 = vadd.f32 %v549, %v576
    %v579 = vxor.u32 %v578, 2147483648
    %v580 = vmul.f32 %v579, 1.442695
    %v581 = vpow.pop %v580
    %v582 = vadd.f32 %v581, 1.0
    %v583 = vrcp.pop %v582
    %v584 = vmul.f32 %v582, %v583
    %v585 = vsub.f32 1.0, %v584
    %v586 = vmul.f32 %v583, %v585
    %v587 = vadd.f32 %v583, %v586
    %vm588 = vweird.f32 %v582
    %vm589 = vweird.f32 %v583
    %vm590 = vmor %vm588, %vm589
    %v591 = vsel %vm590, %v583, %v587
    %v592 = vand.u32 2147483647, %v582
    %vm593 = vcmp.eq.f32.partialorder %v592, 8.507059e+37
    %v594 = vand.u32 %v582, 2147483648
    %v595 = vor.u32 1.1754944e-38, %v594
    %v596 = vsel %vm593, %v595, %v591
    %v597 = vmul.f32 1.0, %v596
    %v598 = vtanh.pop %v578
    %v599 = vsel %vm43, %v597, %v598
    %v600 = vld [vmem:[#allocation3] sm:$0xff]
    %602 = vrot.lane.b32.xlu0 %v600, 32
    %v603 = vpop.permute.xlu0 %602
    %v605 = vmul.f32 %v599, %v603
    %607 = vrot.lane.b32.xlu0 %v599, 32
    %v608 = vpop.permute.xlu0 %607
    %v610 = vmul.f32 %v599, %v608
    %612 = vrot.lane.b32.xlu0 %v610, 32
    %v613 = vpop.permute.xlu0 %612
    %v615 = vadd.f32 %v605, %v613
    %617 = vrot.lane.b32.xlu0 %v615, 96
    %v618 = vpop.permute.xlu0 %617
    %620 = vst.msk [vmem:[#allocation3] sm:$0xff] %vm50, %v618
    %v621 = vtanh.pop %v615
    %623 = vrot.lane.b32.xlu0 %v621, 32
    %v624 = vpop.permute.xlu0 %623
    %v626 = vmul.f32 %v599, %v624
    %628 = vrot.lane.b32.xlu0 %v626, 64
    %v629 = vpop.permute.xlu0 %628
    %631 = vst.msk [vmem:[#allocation2] sm:$0xff] %vm50, %v629
    %s632 = scalar_lea.vmem [#allocation5], 56
    %v633 = vld [vmem:[%s632] sm:$0xff]
    %v634 = vld [vmem:[#allocation2] sm:$0xff]
    %v635 = vld [vmem:[%s1] sm:$0xff]
    %v636 = vld [vmem:[%s1 + $0x8] sm:$0xff]
    %v637 = vld [vmem:[%s1 + $0x10] sm:$0xff]
    %v638 = vld [vmem:[%s1 + $0x18] sm:$0xff]
    %v640 = vsel %vm50, %v634, 0
    %642 = vmatpush.msra.mxu0 0.0
    %643 = vmatpush.msra.mxu0 0.0
    %644 = vmatpush.msra.mxu0 0.0
    %645 = vmatpush.msra.mxu0 0.0
    %646 = vmatpush.msra.mxu0 0.0
    %647 = vmatpush.msra.mxu0 0.0
    %648 = vmatpush.msra.mxu0 0.0
    %649 = vmatpush.msra.mxu0 0.0
    %650 = vmatpush.msra.mxu0 0.0
    %651 = vmatpush.msra.mxu0 0.0
    %652 = vmatpush.msra.mxu0 0.0
    %653 = vmatpush.msra.mxu0 0.0
    %654 = vmatpush.msra.mxu0 %v638
    %655 = vmatpush.msra.mxu0 %v637
    %656 = vmatpush.msra.mxu0 %v636
    %657 = vmatpush.msra.mxu0 %v635
    %658 = vmatmul.f32.gmra.mxu0 %v640
    %v659 = vpop.f32.mrf.mxu0
    %v660 = vadd.f32 0.0, %v659
    %661 = vdwg.mxu0
    %v662 = vadd.f32 %v633, %v660
    %v663 = vxor.u32 %v662, 2147483648
    %v664 = vmul.f32 %v663, 1.442695
    %v665 = vpow.pop %v664
    %v666 = vadd.f32 %v665, 1.0
    %v667 = vrcp.pop %v666
    %v668 = vmul.f32 %v666, %v667
    %v669 = vsub.f32 1.0, %v668
    %v670 = vmul.f32 %v667, %v669
    %v671 = vadd.f32 %v667, %v670
    %vm672 = vweird.f32 %v666
    %vm673 = vweird.f32 %v667
    %vm674 = vmor %vm672, %vm673
    %v675 = vsel %vm674, %v667, %v671
    %v676 = vand.u32 2147483647, %v666
    %vm677 = vcmp.eq.f32.partialorder %v676, 8.507059e+37
    %v678 = vand.u32 %v666, 2147483648
    %v679 = vor.u32 1.1754944e-38, %v678
    %v680 = vsel %vm677, %v679, %v675
    %v681 = vmul.f32 1.0, %v680
    %v682 = vtanh.pop %v662
    %v683 = vsel %vm43, %v681, %v682
    %v684 = vld [vmem:[#allocation3] sm:$0xff]
    %686 = vrot.lane.b32.xlu0 %v684, 32
    %v687 = vpop.permute.xlu0 %686
    %v689 = vmul.f32 %v683, %v687
    %691 = vrot.lane.b32.xlu0 %v683, 32
    %v692 = vpop.permute.xlu0 %691
    %v694 = vmul.f32 %v683, %v692
    %696 = vrot.lane.b32.xlu0 %v694, 32
    %v697 = vpop.permute.xlu0 %696
    %v699 = vadd.f32 %v689, %v697
    %701 = vrot.lane.b32.xlu0 %v699, 96
    %v702 = vpop.permute.xlu0 %701
    %704 = vst.msk [vmem:[#allocation3] sm:$0xff] %vm50, %v702
    %v705 = vtanh.pop %v699
    %707 = vrot.lane.b32.xlu0 %v705, 32
    %v708 = vpop.permute.xlu0 %707
    %v710 = vmul.f32 %v683, %v708
    %712 = vrot.lane.b32.xlu0 %v710, 64
    %v713 = vpop.permute.xlu0 %712
    %715 = vst.msk [vmem:[#allocation2] sm:$0xff] %vm50, %v713
    // Predicated region
    $region26: #{tpu_custom_call.1} parent=1 // pred_check
      %p716 = pneg %p34
    $region27: #{tpu_custom_call.1} parent=1 // pred_check_branch
      %718 = sbr.rel (%p716) target = $region29
    $region28: #{tpu_custom_call.1} parent=1 // pred_region
      %v719 = vld [vmem:[#allocation2] sm:$0xff]
      %v720 = vld [vmem:[%s2] sm:$0xff]
      %v721 = vld [vmem:[%s2 + $0x8] sm:$0xff]
      %v722 = vld [vmem:[%s2 + $0x10] sm:$0xff]
      %v723 = vld [vmem:[%s2 + $0x18] sm:$0xff]
      %s724 = sld [smem:[#allocation4]]
      %v725 = vstv %s724
      %v727 = vsel %vm50, %v719, 0
      %729 = vmatpush.msra.mxu0 0.0
      %730 = vmatpush.msra.mxu0 0.0
      %731 = vmatpush.msra.mxu0 0.0
      %732 = vmatpush.msra.mxu0 0.0
      %733 = vmatpush.msra.mxu0 0.0
      %734 = vmatpush.msra.mxu0 0.0
      %735 = vmatpush.msra.mxu0 0.0
      %736 = vmatpush.msra.mxu0 0.0
      %737 = vmatpush.msra.mxu0 0.0
      %738 = vmatpush.msra.mxu0 0.0
      %739 = vmatpush.msra.mxu0 0.0
      %740 = vmatpush.msra.mxu0 0.0
      %741 = vmatpush.msra.mxu0 %v723
      %742 = vmatpush.msra.mxu0 %v722
      %743 = vmatpush.msra.mxu0 %v721
      %744 = vmatpush.msra.mxu0 %v720
      %745 = vmatmul.f32.gmra.mxu0 %v727
      %v746 = vpop.f32.mrf.mxu0
      %v747 = vadd.f32 %v725, %v746
      %748 = vdwg.mxu0
      %vm749 = vcmask 7168
      %750 = vst.msk [vmem:[%s4] sm:$0xff] %vm749, %v747
    $region29: #{tpu_custom_call.1} parent=1 // pred_fallthru
      _
    // Predicated region
    $region30: #{tpu_custom_call.1} parent=1 // pred_check
      _
    $region31: #{tpu_custom_call.1} parent=1 // pred_check_branch
      %752 = sbr.rel (0) target = $region33
    $region32: #{tpu_custom_call.1} parent=1 // pred_region
      _
    $region33: #{tpu_custom_call.1} parent=1 // pred_fallthru
      _
    // Predicated region
    $region34: #{tpu_custom_call.1} parent=1 // pred_check
      _
    $region35: #{tpu_custom_call.1} parent=1 // pred_check_branch
      %754 = sbr.rel (0) target = $region37
    $region36: #{tpu_custom_call.1} parent=1 // pred_region
      _
    $region37: #{tpu_custom_call.1} parent=1 // pred_fallthru
      _
    %755 = vsyncpa [#allocation6], 1

</llo_original>
